<compile_context>
chip_gen: v7x
topology: tpu7x:2x2x1
jax: 0.10.0
libtpu: 0.0.40
codegen_flags: <defaults>
</compile_context>

<pallas_src>
import functools

import jax
import jax.numpy as jnp
from jax import lax
from jax.experimental import pallas as pl
from jax.experimental.pallas import tpu as pltpu

NUM_GROUPS = 8
EPS = 1e-5
MXU_DTYPE = jnp.bfloat16   # MXU peak is bf16 on v5e/v6e/v7x; all stats/affine math stays f32.


def conv_gn_relu_kernel(x_ref, w_ref, p_ref, gmat_ref, o_ref, *, n_pix):
    # x_ref:    (B_blk, 9*Cin, H*Wp)  bf16 tap-stacked RHS (junk columns are exactly zero)
    # w_ref:    (Cout, 9*Cin)         bf16 conv weight, contraction axis ordered (kh, kw, cin)
    # p_ref:    (Cout, 3)             f32 packed [conv bias | GN gamma | GN beta]
    # gmat_ref: (Cout, Cout)          f32 block-diagonal same-group indicator
    # o_ref:    (B_blk, Cout, H*Wp)   output (junk columns, if any, dropped by the wrapper)
    cout = o_ref.shape[1]
    cpg = cout // NUM_GROUPS
    inv_n = 1.0 / (n_pix * cpg)

    w_mat = w_ref[...]                       # (Cout, 9*Cin) bf16
    gmat = gmat_ref[...]                     # (Cout, Cout)  f32
    bvec = p_ref[:, 0:1]                     # (Cout, 1) conv bias
    gamma = p_ref[:, 1:2]                    # (Cout, 1)
    beta = p_ref[:, 2:3]                     # (Cout, 1)

    # Short unrolled loop over the samples in this block (amortizes grid-step overhead).
    for b in range(x_ref.shape[0]):
        # --- 3x3 conv as ONE MXU matmul, bf16 x bf16 -> f32 accumulate.
        acc = jnp.dot(w_mat, x_ref[b], preferred_element_type=jnp.float32)  # (Cout, HWp) f32

        # --- GroupNorm stats: per-channel sum / sum-of-squares (junk columns contribute 0),
        #     conv bias folded in analytically (no per-pixel bias pass).
        ch_s1 = jnp.sum(acc, axis=1, keepdims=True)            # (Cout, 1)
        ch_s2 = jnp.sum(acc * acc, axis=1, keepdims=True)      # (Cout, 1)
        s1 = ch_s1 + n_pix * bvec
        s2 = ch_s2 + 2.0 * bvec * ch_s1 + n_pix * bvec * bvec

        # Combine channels within each group (tiny block-diagonal matmul); the result is each
        # group's total replicated per channel.
        g_s1 = jnp.dot(gmat, s1, preferred_element_type=jnp.float32)
        g_s2 = jnp.dot(gmat, s2, preferred_element_type=jnp.float32)
        mean = g_s1 * inv_n
        var = g_s2 * inv_n - mean * mean                        # biased variance, like torch

        # --- single fused affine (conv bias + GroupNorm) + ReLU.
        scale = gamma * lax.rsqrt(var + EPS)                    # (Cout, 1)
        shift = beta + (bvec - mean) * scale                    # (Cout, 1)
        o_ref[b] = jnp.maximum(acc * scale + shift, 0.0).astype(o_ref.dtype)


def _pick_batch_block(n):
    """Samples per grid step: batch enough to amortize per-step overhead on single-TC
    chips, but keep >= 2 grid steps when possible so both v7x TensorCores get work."""
    target = max(1, n // 2)
    cap = min(target, 8)
    for b in range(cap, 0, -1):
        if n % b == 0:
            return b
    return 1


def _pick_padded_width(h, w):
    """Smallest output row width wp >= w such that h*wp is a multiple of 128 (fully
    lane-dense accumulator / stores); fall back to w if that would over-pad."""
    for cand in range(w, 2 * w + 1):
        if (h * cand) % 128 == 0:
            return cand
    return w


@jax.jit
def conv2d_block(x_nchw, weight, bias, gamma, beta):
    """x_nchw: (N, Cin, H, W); weight: (Cout, Cin, 3, 3) — PyTorch conventions."""
    n, cin, h, w = x_nchw.shape
    cout = weight.shape[0]
    wp = _pick_padded_width(h, w)
    hwp = h * wp

    # Zero-pad spatially, then build the tap-stacked RHS (N, 9*Cin, H*Wp).  Only valid output
    # columns get real data; the (wp - w) junk columns per row are exact zeros, so they drop
    # out of the GroupNorm statistics with no in-kernel mask.
    xpad = jnp.pad(x_nchw, ((0, 0), (0, 0), (1, 1), (1, 1)))            # (N, Cin, H+2, W+2)
    taps = [xpad[:, :, kh:kh + h, kw:kw + w] for kh in range(3) for kw in range(3)]
    xt = jnp.stack(taps, axis=1)                                        # (N, 9, Cin, H, W)
    if wp > w:
        xt = jnp.pad(xt, ((0, 0), (0, 0), (0, 0), (0, 0), (0, wp - w)))
    xt = xt.reshape(n, 9 * cin, hwp).astype(MXU_DTYPE)

    # (Cout, Cin, 3, 3) -> (Cout, 9*Cin) with contraction ordered (kh, kw, cin) to match xt.
    w_mat = jnp.transpose(weight, (0, 2, 3, 1)).reshape(cout, 9 * cin).astype(MXU_DTYPE)

    # Packed per-channel params: [bias | gamma | beta].
    params = jnp.stack([bias, gamma, beta], axis=1).astype(jnp.float32)  # (Cout, 3)

    # Block-diagonal same-group indicator matrix for combining per-channel stats.
    cpg = cout // NUM_GROUPS
    cid = jnp.arange(cout, dtype=jnp.int32) // cpg
    gmat = (cid[:, None] == cid[None, :]).astype(jnp.float32)            # (Cout, Cout)

    b_blk = _pick_batch_block(n)
    kern = functools.partial(conv_gn_relu_kernel, n_pix=float(h * w))
    out = pl.pallas_call(
        kern,
        out_shape=jax.ShapeDtypeStruct((n, cout, hwp), x_nchw.dtype),
        grid=(n // b_blk,),
        in_specs=[
            pl.BlockSpec((b_blk, 9 * cin, hwp), lambda i: (i, 0, 0)),
            pl.BlockSpec((cout, 9 * cin), lambda i: (0, 0)),
            pl.BlockSpec((cout, 3), lambda i: (0, 0)),
            pl.BlockSpec((cout, cout), lambda i: (0, 0)),
        ],
        out_specs=pl.BlockSpec((b_blk, cout, hwp), lambda i: (i, 0, 0)),
        compiler_params=pltpu.CompilerParams(
            dimension_semantics=("parallel",),
            vmem_limit_bytes=32 * 1024 * 1024),
    )(xt, w_mat, params, gmat)

    # Already channel-major NCHW; just drop width-pad junk columns (if any).
    out = out.reshape(n, cout, h, wp)
    if wp > w:
        out = out[:, :, :, :w]
    return out


def reference(x_nchw, weight, bias, gamma, beta):
    """Pure-JAX reference matching PyTorch Conv2d -> GroupNorm(8) -> ReLU."""
    x_nhwc = jnp.transpose(x_nchw, (0, 2, 3, 1)).astype(jnp.float32)
    w_hwio = jnp.transpose(weight, (2, 3, 1, 0)).astype(jnp.float32)
    y = lax.conv_general_dilated(
        x_nhwc, w_hwio, window_strides=(1, 1), padding=((1, 1), (1, 1)),
        dimension_numbers=("NHWC", "HWIO", "NHWC"))
    y = y + bias[None, None, None, :]
    n, h, w, c = y.shape
    cpg = c // NUM_GROUPS
    yg = y.reshape(n, h, w, NUM_GROUPS, cpg)
    mean = jnp.mean(yg, axis=(1, 2, 4), keepdims=True)
    var = jnp.mean(jnp.square(yg - mean), axis=(1, 2, 4), keepdims=True)
    yg = (yg - mean) * lax.rsqrt(var + EPS)
    y = yg.reshape(n, h, w, c) * gamma[None, None, None, :] + beta[None, None, None, :]
    y = jnp.maximum(y, 0.0)
    return jnp.transpose(y, (0, 3, 1, 2))


if __name__ == "__main__":
    # Small shapes: batch=2, input_dim=4, out_dim=16 (divisible by 8 groups), 16x16 spatial.
    N, CIN, COUT, H, W = 2, 4, 16, 16, 16
    key = jax.random.PRNGKey(0)
    kx, kw, kb, kg, kbe = jax.random.split(key, 5)

    x = jax.random.normal(kx, (N, CIN, H, W), dtype=jnp.float32)
    weight = jax.random.normal(kw, (COUT, CIN, 3, 3), dtype=jnp.float32) * 0.1
    bias = jax.random.normal(kb, (COUT,), dtype=jnp.float32) * 0.1
    gamma = 1.0 + 0.1 * jax.random.normal(kg, (COUT,), dtype=jnp.float32)
    beta = 0.1 * jax.random.normal(kbe, (COUT,), dtype=jnp.float32)

    out = jax.block_until_ready(conv2d_block(x, weight, bias, gamma, beta))

    # Compare against a reference run on the same bf16-rounded MXU inputs (the only deviation
    # from pure f32 is the documented bf16 input cast; all accumulation/GN math is f32).
    x_r = x.astype(jnp.bfloat16).astype(jnp.float32)
    w_r = weight.astype(jnp.bfloat16).astype(jnp.float32)
    ref = jax.block_until_ready(reference(x_r, w_r, bias, gamma, beta))

    import numpy as np
    np.testing.assert_allclose(np.asarray(out), np.asarray(ref), atol=2e-4, rtol=2e-3)

    print("KERNEL_OK")
</pallas_src>

<mosaic_0001>
module attributes {stable_mosaic.version = 11 : i64} {
  func.func @conv_gn_relu_kernel(%arg0: i32, %arg1: memref<1x36x256xbf16, #tpu.memory_space<vmem>>, %arg2: memref<16x36xbf16, #tpu.memory_space<vmem>>, %arg3: memref<16x3xf32, #tpu.memory_space<vmem>>, %arg4: memref<16x16xf32, #tpu.memory_space<vmem>>, %arg5: memref<1x16x256xf32, #tpu.memory_space<vmem>>) attributes {dimension_semantics = [#tpu.dimension_semantics<parallel>], iteration_bounds = array<i64: 2>, scalar_prefetch = 0 : i64, scratch_operands = 0 : i64, tpu.core_type = #tpu.core_type<tc>, window_params = [{transform_indices = @transform_0, window_bounds = array<i64: 1, 36, 256>}, {pipeline_mode = #tpu.pipeline_mode<synchronous>, transform_indices = @transform_1, window_bounds = array<i64: 16, 36>}, {pipeline_mode = #tpu.pipeline_mode<synchronous>, transform_indices = @transform_2, window_bounds = array<i64: 16, 3>}, {pipeline_mode = #tpu.pipeline_mode<synchronous>, transform_indices = @transform_3, window_bounds = array<i64: 16, 16>}, {transform_indices = @transform_4, window_bounds = array<i64: 1, 16, 256>}]} {
    %c0 = arith.constant 0 : index
    %c0_0 = arith.constant 0 : index
    %0 = vector.load %arg2[%c0, %c0_0] : memref<16x36xbf16, #tpu.memory_space<vmem>>, vector<16x36xbf16>
    %c0_1 = arith.constant 0 : index
    %c0_2 = arith.constant 0 : index
    %1 = vector.load %arg4[%c0_1, %c0_2] : memref<16x16xf32, #tpu.memory_space<vmem>>, vector<16x16xf32>
    %c0_3 = arith.constant 0 : index
    %c0_4 = arith.constant 0 : index
    %2 = vector.load %arg3[%c0_3, %c0_4] : memref<16x3xf32, #tpu.memory_space<vmem>>, vector<16x1xf32>
    %c0_5 = arith.constant 0 : index
    %c1 = arith.constant 1 : index
    %3 = vector.load %arg3[%c0_5, %c1] : memref<16x3xf32, #tpu.memory_space<vmem>>, vector<16x1xf32>
    %c0_6 = arith.constant 0 : index
    %c2 = arith.constant 2 : index
    %4 = vector.load %arg3[%c0_6, %c2] : memref<16x3xf32, #tpu.memory_space<vmem>>, vector<16x1xf32>
    %c0_7 = arith.constant 0 : index
    %c0_8 = arith.constant 0 : index
    %c0_9 = arith.constant 0 : index
    %5 = vector.load %arg1[%c0_7, %c0_8, %c0_9] : memref<1x36x256xbf16, #tpu.memory_space<vmem>>, vector<1x36x256xbf16>
    %6 = vector.shape_cast %5 : vector<1x36x256xbf16> to vector<36x256xbf16>
    %cst = arith.constant dense<0.000000e+00> : vector<16x256xf32>
    %7 = tpu.matmul %0, %6, %cst {dimension_numbers = #tpu.dot_dimension_numbers<[1], [0], [0], [1], [0, 0, 1, 1], [], []>} : vector<16x36xbf16>, vector<36x256xbf16>, vector<16x256xf32> -> vector<16x256xf32>
    %cst_10 = arith.constant dense<0.000000e+00> : vector<16xf32>
    %8 = vector.multi_reduction <add>, %7, %cst_10 [1] : vector<16x256xf32> to vector<16xf32>
    %9 = vector.shape_cast %8 : vector<16xf32> to vector<16x1xf32>
    %10 = arith.mulf %7, %7 : vector<16x256xf32>
    %cst_11 = arith.constant dense<0.000000e+00> : vector<16xf32>
    %11 = vector.multi_reduction <add>, %10, %cst_11 [1] : vector<16x256xf32> to vector<16xf32>
    %12 = vector.shape_cast %11 : vector<16xf32> to vector<16x1xf32>
    %cst_12 = arith.constant 2.560000e+02 : f32
    %13 = vector.broadcast %cst_12 : f32 to vector<16x1xf32>
    %14 = arith.mulf %13, %2 : vector<16x1xf32>
    %15 = arith.addf %9, %14 : vector<16x1xf32>
    %cst_13 = arith.constant 2.000000e+00 : f32
    %16 = vector.broadcast %cst_13 : f32 to vector<16x1xf32>
    %17 = arith.mulf %16, %2 : vector<16x1xf32>
    %18 = arith.mulf %17, %9 : vector<16x1xf32>
    %19 = arith.addf %12, %18 : vector<16x1xf32>
    %cst_14 = arith.constant 2.560000e+02 : f32
    %20 = vector.broadcast %cst_14 : f32 to vector<16x1xf32>
    %21 = arith.mulf %20, %2 : vector<16x1xf32>
    %22 = arith.mulf %21, %2 : vector<16x1xf32>
    %23 = arith.addf %19, %22 : vector<16x1xf32>
    %cst_15 = arith.constant dense<0.000000e+00> : vector<16x1xf32>
    %24 = tpu.matmul %1, %15, %cst_15 {dimension_numbers = #tpu.dot_dimension_numbers<[1], [0], [0], [1], [0, 0, 1, 1], [], []>} : vector<16x16xf32>, vector<16x1xf32>, vector<16x1xf32> -> vector<16x1xf32>
    %cst_16 = arith.constant dense<0.000000e+00> : vector<16x1xf32>
    %25 = tpu.matmul %1, %23, %cst_16 {dimension_numbers = #tpu.dot_dimension_numbers<[1], [0], [0], [1], [0, 0, 1, 1], [], []>} : vector<16x16xf32>, vector<16x1xf32>, vector<16x1xf32> -> vector<16x1xf32>
    %cst_17 = arith.constant 0.001953125 : f32
    %26 = vector.broadcast %cst_17 : f32 to vector<16x1xf32>
    %27 = arith.mulf %24, %26 : vector<16x1xf32>
    %cst_18 = arith.constant 0.001953125 : f32
    %28 = vector.broadcast %cst_18 : f32 to vector<16x1xf32>
    %29 = arith.mulf %25, %28 : vector<16x1xf32>
    %30 = arith.mulf %27, %27 : vector<16x1xf32>
    %31 = arith.subf %29, %30 : vector<16x1xf32>
    %cst_19 = arith.constant 9.99999974E-6 : f32
    %32 = vector.broadcast %cst_19 : f32 to vector<16x1xf32>
    %33 = arith.addf %31, %32 : vector<16x1xf32>
    %34 = math.rsqrt %33 : vector<16x1xf32>
    %35 = arith.mulf %3, %34 : vector<16x1xf32>
    %36 = arith.subf %2, %27 : vector<16x1xf32>
    %37 = arith.mulf %36, %35 : vector<16x1xf32>
    %38 = arith.addf %4, %37 : vector<16x1xf32>
    %39 = vector.broadcast %35 : vector<16x1xf32> to vector<16x256xf32>
    %40 = arith.mulf %7, %39 : vector<16x256xf32>
    %41 = vector.broadcast %38 : vector<16x1xf32> to vector<16x256xf32>
    %42 = arith.addf %40, %41 : vector<16x256xf32>
    %cst_20 = arith.constant 0.000000e+00 : f32
    %43 = vector.broadcast %cst_20 : f32 to vector<16x256xf32>
    %44 = arith.maximumf %42, %43 : vector<16x256xf32>
    %c0_21 = arith.constant 0 : index
    %c0_22 = arith.constant 0 : index
    %c0_23 = arith.constant 0 : index
    %45 = vector.load %arg5[%c0_21, %c0_22, %c0_23] : memref<1x16x256xf32, #tpu.memory_space<vmem>>, vector<1x16x256xf32>
    %46 = vector.shape_cast %45 : vector<1x16x256xf32> to vector<16x256xf32>
    %47 = vector.shape_cast %44 : vector<16x256xf32> to vector<1x16x256xf32>
    tpu.vector_store %arg5[%c0_21, %c0_22, %c0_23], %47 {strides = array<i32>} : memref<1x16x256xf32, #tpu.memory_space<vmem>>, vector<1x16x256xf32>,
    return
  }
  func.func @transform_0(%arg0: i32) -> (i32, i32, i32) {
    %c0_i32 = arith.constant 0 : i32
    %c0_i32_0 = arith.constant 0 : i32
    %c0_i32_1 = arith.constant 0 : i32
    return %arg0, %c0_i32, %c0_i32_0 : i32, i32, i32
  }
  func.func @transform_1(%arg0: i32) -> (i32, i32) {
    %c0_i32 = arith.constant 0 : i32
    %c0_i32_0 = arith.constant 0 : i32
    %c0_i32_1 = arith.constant 0 : i32
    return %c0_i32, %c0_i32_0 : i32, i32
  }
  func.func @transform_2(%arg0: i32) -> (i32, i32) {
    %c0_i32 = arith.constant 0 : i32
    %c0_i32_0 = arith.constant 0 : i32
    %c0_i32_1 = arith.constant 0 : i32
    return %c0_i32, %c0_i32_0 : i32, i32
  }
  func.func @transform_3(%arg0: i32) -> (i32, i32) {
    %c0_i32 = arith.constant 0 : i32
    %c0_i32_0 = arith.constant 0 : i32
    %c0_i32_1 = arith.constant 0 : i32
    return %c0_i32, %c0_i32_0 : i32, i32
  }
  func.func @transform_4(%arg0: i32) -> (i32, i32, i32) {
    %c0_i32 = arith.constant 0 : i32
    %c0_i32_0 = arith.constant 0 : i32
    %c0_i32_1 = arith.constant 0 : i32
    return %arg0, %c0_i32, %c0_i32_0 : i32, i32, i32
  }
}

</mosaic_0001>

<llo_original>
// kernel: conv2d_block.1
$region0: #{conv2d_block.1}
  #allocation0 [shape = 'u32[]', space=smem, size = 0x4, offset = 0x4, fixed_abs, tag = 'smem constant byte address 0x4 - core index']
  #allocation1 [shape = 'u32[144,128]{1,0:T(1,128)}', space=vmem, size = 0x12000, scoped, tag = 'internal scratch']
  %s0 = inlined_call_operand.vmem [shape: bf16[2,36,256], index: 0, kind: input, shape index: {}]
  %s1 = inlined_call_operand.vmem [shape: bf16[16,36], index: 1, kind: input, shape index: {}]
  %s2 = inlined_call_operand.vmem [shape: f32[16,3], index: 2, kind: input, shape index: {}]
  %s3 = inlined_call_operand.vmem [shape: f32[16,16], index: 3, kind: input, shape index: {}]
  %s4 = inlined_call_operand.vmem [shape: f32[2,16,256], index: 4, kind: output, shape index: {}]
  %s5 = sld [smem:[#allocation0]]
  $region49: #{conv2d_block.1} parent=0
    _
  %s7 = ssub.s32 1, %s5
  %s8 = scalar_select 0, %s7, %s5
  loop: start=0, step=1, limit=4
  $region2: #{conv2d_block.1} parent=0 // loop_pre_header
    _
  $region3: #{conv2d_block.1} parent=0 // loop_header
    %s10 = sphi 0, %s14
    %p11 = scmp.ge.s32.totalorder %s10, 4
    %s20 = sphi 0, %s22
    %s23 = sphi 0, %s20
    %s24 = sphi 0, %s23
    %s40 = sphi 0, %s24
    %s44 = sphi 0, %s44
    %s46 = sphi 0, %s44
    %s47 = sphi 0, %s46
    %s61 = sphi 0, %s47
    %s65 = sphi 0, %s65
    %s67 = sphi 0, %s65
    %s68 = sphi 0, %s67
    %s82 = sphi 0, %s68
    %s86 = sphi 0, %s86
    %s88 = sphi 0, %s86
    %s89 = sphi 0, %s88
    %s103 = sphi 0, %s89
    %s109 = sphi 0, %s111
    %s112 = sphi 0, %s109
    %s113 = sphi 0, %s112
    %s129 = sphi 0, %s113
  $region4: #{conv2d_block.1} parent=0 // loop_header_branch
    %13 = sbr.rel (%p11) target = $region8
  $region5: #{conv2d_block.1} parent=0 // loop_body
    %s15 = ssub.s32 %s10, 1
    %s16 = ssub.s32 %s10, 2
    %s17 = sadd.s32 %s10, 1
    %s18 = ssub.s32 %s10, %s17
    %p19 = scmp.eq.s32.totalorder %s18, 0
    %s21 = sadd.s32 %s20, 1
    %s22 = scalar_select %p19, %s20, %s21
    %p25 = pneg %p19
    %p26 = scmp.eq.s32.totalorder %s10, 1
    %p27 = por %p25, %p26
    %p28 = scmp.ne.s32.totalorder %s20, %s23
    %p29 = scmp.eq.s32.totalorder %s10, 0
    %p30 = por %p28, %p29
    %p31 = scmp.ne.s32.totalorder %s20, %s23
    %p32 = scmp.eq.s32.totalorder %s15, 1
    %p33 = por %p31, %p32
    %p34 = scmp.ne.s32.totalorder %s23, %s24
    %p35 = scmp.eq.s32.totalorder %s15, 0
    %p36 = por %p34, %p35
    %p37 = scmp.ne.s32.totalorder %s23, %s24
    %p38 = scmp.eq.s32.totalorder %s16, 1
    %p39 = por %p37, %p38
    %p41 = scmp.ne.s32.totalorder %s24, %s40
    %p42 = scmp.eq.s32.totalorder %s16, 0
    %p43 = por %p41, %p42
    %s45 = sadd.s32 %s44, 1
    %p48 = scmp.eq.s32.totalorder %s10, 1
    %p49 = scmp.ne.s32.totalorder %s44, %s46
    %p50 = scmp.eq.s32.totalorder %s10, 0
    %p51 = por %p49, %p50
    %p52 = scmp.ne.s32.totalorder %s44, %s46
    %p53 = scmp.eq.s32.totalorder %s15, 1
    %p54 = por %p52, %p53
    %p55 = scmp.ne.s32.totalorder %s46, %s47
    %p56 = scmp.eq.s32.totalorder %s15, 0
    %p57 = por %p55, %p56
    %p58 = scmp.ne.s32.totalorder %s46, %s47
    %p59 = scmp.eq.s32.totalorder %s16, 1
    %p60 = por %p58, %p59
    %p62 = scmp.ne.s32.totalorder %s47, %s61
    %p63 = scmp.eq.s32.totalorder %s16, 0
    %p64 = por %p62, %p63
    %s66 = sadd.s32 %s65, 1
    %p69 = scmp.eq.s32.totalorder %s10, 1
    %p70 = scmp.ne.s32.totalorder %s65, %s67
    %p71 = scmp.eq.s32.totalorder %s10, 0
    %p72 = por %p70, %p71
    %p73 = scmp.ne.s32.totalorder %s65, %s67
    %p74 = scmp.eq.s32.totalorder %s15, 1
    %p75 = por %p73, %p74
    %p76 = scmp.ne.s32.totalorder %s67, %s68
    %p77 = scmp.eq.s32.totalorder %s15, 0
    %p78 = por %p76, %p77
    %p79 = scmp.ne.s32.totalorder %s67, %s68
    %p80 = scmp.eq.s32.totalorder %s16, 1
    %p81 = por %p79, %p80
    %p83 = scmp.ne.s32.totalorder %s68, %s82
    %p84 = scmp.eq.s32.totalorder %s16, 0
    %p85 = por %p83, %p84
    %s87 = sadd.s32 %s86, 1
    %p90 = scmp.eq.s32.totalorder %s10, 1
    %p91 = scmp.ne.s32.totalorder %s86, %s88
    %p92 = scmp.eq.s32.totalorder %s10, 0
    %p93 = por %p91, %p92
    %p94 = scmp.ne.s32.totalorder %s86, %s88
    %p95 = scmp.eq.s32.totalorder %s15, 1
    %p96 = por %p94, %p95
    %p97 = scmp.ne.s32.totalorder %s88, %s89
    %p98 = scmp.eq.s32.totalorder %s15, 0
    %p99 = por %p97, %p98
    %p100 = scmp.ne.s32.totalorder %s88, %s89
    %p101 = scmp.eq.s32.totalorder %s16, 1
    %p102 = por %p100, %p101
    %p104 = scmp.ne.s32.totalorder %s89, %s103
    %p105 = scmp.eq.s32.totalorder %s16, 0
    %p106 = por %p104, %p105
    %s107 = ssub.s32 %s10, %s17
    %p108 = scmp.eq.s32.totalorder %s107, 0
    %s110 = sadd.s32 %s109, 1
    %s111 = scalar_select %p108, %s109, %s110
    %p114 = pneg %p108
    %p115 = scmp.eq.s32.totalorder %s10, 1
    %p116 = por %p114, %p115
    %p117 = scmp.ne.s32.totalorder %s109, %s112
    %p118 = scmp.eq.s32.totalorder %s10, 0
    %p119 = por %p117, %p118
    %p120 = scmp.ne.s32.totalorder %s109, %s112
    %p121 = scmp.eq.s32.totalorder %s15, 1
    %p122 = por %p120, %p121
    %p123 = scmp.ne.s32.totalorder %s112, %s113
    %p124 = scmp.eq.s32.totalorder %s15, 0
    %p125 = por %p123, %p124
    %p126 = scmp.ne.s32.totalorder %s112, %s113
    %p127 = scmp.eq.s32.totalorder %s16, 1
    %p128 = por %p126, %p127
    %p130 = scmp.ne.s32.totalorder %s113, %s129
    %p131 = scmp.eq.s32.totalorder %s16, 0
    %p132 = por %p130, %p131
    %p133 = scmp.le.s32.totalorder 1, %s10
    %p134 = scmp.lt.s32.totalorder %s10, 3
    %p135 = pnand %p133, %p134
    %p136 = pneg %p135
    // Predicated region
    $region9: #{conv2d_block.1} parent=5 // pred_check
      _
    $region10: #{conv2d_block.1} parent=5 // pred_check_branch
      %138 = sbr.rel (%p135) target = $region12
    $region11: #{conv2d_block.1} parent=5 // pred_region
      %s139 = ssub.s32 %s10, 1
      // Predicated region
      $region13: #{conv2d_block.1} parent=11 // pred_check
        %p140 = pneg %p57
      $region14: #{conv2d_block.1} parent=11 // pred_check_branch
        %142 = sbr.rel (%p140) target = $region16
      $region15: #{conv2d_block.1} parent=11 // pred_region
        _
      $region16: #{conv2d_block.1} parent=11 // pred_fallthru
        _
      // Predicated region
      $region17: #{conv2d_block.1} parent=11 // pred_check
        %p143 = pneg %p78
      $region18: #{conv2d_block.1} parent=11 // pred_check_branch
        %145 = sbr.rel (%p143) target = $region20
      $region19: #{conv2d_block.1} parent=11 // pred_region
        _
      $region20: #{conv2d_block.1} parent=11 // pred_fallthru
        _
      // Predicated region
      $region21: #{conv2d_block.1} parent=11 // pred_check
        %p146 = pneg %p99
      $region22: #{conv2d_block.1} parent=11 // pred_check_branch
        %148 = sbr.rel (%p146) target = $region24
      $region23: #{conv2d_block.1} parent=11 // pred_region
        _
      $region24: #{conv2d_block.1} parent=11 // pred_fallthru
        _
    $region12: #{conv2d_block.1} parent=5 // pred_fallthru
      _
    %p149 = scmp.lt.s32.totalorder %s10, 2
    // Predicated region
    $region25: #{conv2d_block.1} parent=5 // pred_check
      %p150 = pneg %p149
    $region26: #{conv2d_block.1} parent=5 // pred_check_branch
      %152 = sbr.rel (%p150) target = $region28
    $region27: #{conv2d_block.1} parent=5 // pred_region
      // Predicated region
      $region29: #{conv2d_block.1} parent=27 // pred_check
        %p153 = pneg %p30
      $region30: #{conv2d_block.1} parent=27 // pred_check_branch
        %155 = sbr.rel (%p153) target = $region32
      $region31: #{conv2d_block.1} parent=27 // pred_region
        %p156 = scmp.lt.s32.totalorder %s10, 1
        %s157 = scalar_select %p156, %s10, 1
        %s158 = smul.addr %s157, 10
        %s159 = smul.addr %s158, 4
        %s160 = scalar_lea.vmem %s0, %s159
      $region32: #{conv2d_block.1} parent=27 // pred_fallthru
        _
    $region28: #{conv2d_block.1} parent=5 // pred_fallthru
      _
    %p161 = scmp.le.s32.totalorder 1, %s10
    %p162 = scmp.lt.s32.totalorder %s10, 3
    %p163 = pnand %p161, %p162
    %p164 = pneg %p163
    // Predicated region
    $region33: #{conv2d_block.1} parent=5 // pred_check
      _
    $region34: #{conv2d_block.1} parent=5 // pred_check_branch
      %166 = sbr.rel (%p163) target = $region36
    $region35: #{conv2d_block.1} parent=5 // pred_region
      %s167 = ssub.s32 %s10, 1
      %p168 = scmp.lt.s32.totalorder %s15, 1
      %s169 = scalar_select %p168, %s15, 1
      %s170 = smul.addr %s169, 10
      %s171 = smul.addr %s170, 4
      %s172 = scalar_lea.vmem %s0, %s171
      %p173 = pneg %p36
      %p174 = pneg %p33
      %p175 = pneg %p57
      %p176 = pneg %p54
      %p177 = pneg %p78
      %p178 = pneg %p75
      %p179 = pneg %p99
      %p180 = pneg %p96
      %p181 = pneg %p125
      %p182 = pneg %p122
      %p183 = scmp.lt.s32.totalorder %s15, 1
      %s184 = scalar_select %p183, %s15, 1
      %s185 = smul.addr %s184, 4
      %s186 = smul.addr %s185, 8
      %s187 = scalar_lea.vmem %s4, %s186
      %p188 = scmp.lt.s32.totalorder %s15, 1
      %s189 = scalar_select %p188, %s15, 1
      %s190 = smul.addr %s189, 10
      %s191 = smul.addr %s190, 4
      %s192 = scalar_lea.vmem %s0, %s191
      %p193 = scmp.lt.s32.totalorder %s15, 1
      %s194 = scalar_select %p193, %s15, 1
      %s195 = smul.addr %s194, 4
      %s196 = smul.addr %s195, 8
      %s197 = scalar_lea.vmem %s4, %s196
      %v199 = vld [vmem:[%s1] sm:$0xf]
      %v200 = vld [vmem:[%s1 + $0x4] sm:$0xf]
      %v201 = vld [vmem:[%s3] sm:$0xff]
      %v202 = vld [vmem:[%s3 + $0x8] sm:$0xff]
      %v203 = vld [vmem:[%s2] sm:$0xff]
      %v204 = vld [vmem:[%s2 + $0x8] sm:$0xff]
      %v205 = vld [vmem:[%s192] sm:$0xff]
      %v206 = vld [vmem:[%s192 + $0x8] sm:$0xff]
      %v207 = vld [vmem:[%s192 + $0x10] sm:$0xff]
      %v208 = vld [vmem:[%s192 + $0x18] sm:$0xff]
      %v209 = vld [vmem:[%s192 + $0x20] sm:$0x33]
      %v212 = vunpack.c.l.b16 %v199
      %v213 = vunpack.c.l.b16 %v200
      %v214 = vpack.c.b16 %v213, %v212
      %v220 = vunpack.c.l.b16 %v205
      %v221 = vunpack.c.h.b16 %v205
      %v222 = vunpack.c.l.b16 %v206
      %v223 = vunpack.c.h.b16 %v206
      %v224 = vunpack.c.l.b16 %v207
      %v225 = vunpack.c.h.b16 %v207
      %v226 = vunpack.c.l.b16 %v208
      %v227 = vunpack.c.h.b16 %v208
      %v228 = vunpack.c.l.b16 %v209
      %v229 = vunpack.c.h.b16 %v209
      %v230 = vpack.c.b16 %v222, %v220
      %v231 = vpack.c.b16 %v223, %v221
      %v232 = vpack.c.b16 %v226, %v224
      %v233 = vpack.c.b16 %v227, %v225
      %v234 = vpack.c.b16 %v228, %v228
      %v235 = vpack.c.b16 %v229, %v229
      %vm240 = vcmask 293888
      %v242 = vsel %vm240, %v214, 0
      %vm244 = vcmask 1041408
      %v246 = vsel %vm244, %v234, 0
      %v249 = vsel %vm244, %v235, 0
      %251 = vmatprep.subr.bf16.mxu0 %v231
      %252 = vmatpush1.bf16.msra.mxu0 %v230
      %253 = vmatprep.subr.bf16.mxu0 %v233
      %254 = vmatpush1.bf16.msra.mxu0 %v232
      %255 = vmatprep.subr.bf16.mxu0 %v249
      %256 = vmatpush1.bf16.msra.mxu0 %v246
      %257 = vmatprep.subr.bf16.mxu0 0
      %258 = vmatpush1.bf16.msra.mxu0 0
      %259 = vmatprep.subr.bf16.mxu0 0
      %260 = vmatpush1.bf16.msra.mxu0 0
      %261 = vmatprep.subr.bf16.mxu0 0
      %262 = vmatpush1.bf16.msra.mxu0 0
      %263 = vmatprep.subr.bf16.mxu0 0
      %264 = vmatpush1.bf16.msra.mxu0 0
      %265 = vmatprep.subr.bf16.mxu0 0
      %266 = vmatpush1.bf16.msra.mxu0 0
      %267 = vmatprep.subr.bf16.mxu0 0
      %268 = vmatpush1.bf16.msra.mxu0 0
      %269 = vmatprep.subr.bf16.mxu0 0
      %270 = vmatpush1.bf16.msra.mxu0 0
      %271 = vmatprep.subr.bf16.mxu0 0
      %272 = vmatpush1.bf16.msra.mxu0 0
      %273 = vmatprep.subr.bf16.mxu0 0
      %274 = vmatpush1.bf16.msra.mxu0 0
      %275 = vmatprep.subr.bf16.mxu0 0
      %276 = vmatpush1.bf16.msra.mxu0 0
      %277 = vmatprep.subr.bf16.mxu0 0
      %278 = vmatpush1.bf16.msra.mxu0 0
      %279 = vmatprep.subr.bf16.mxu0 0
      %280 = vmatpush1.bf16.msra.mxu0 0
      %281 = vmatprep.subr.bf16.mxu0 0
      %282 = vmatpush1.bf16.msra.mxu0 0
      %283 = vmatprep.mubr.bf16.mxu0 0
      %284 = vmatmul.mubr.bf16.gmra.mrb[0].mxu0 %v242
      %v285 = vpop.f32.mrb[0].mxu0
      %v286 = vadd.f32 0.0, %v285
      %v287 = vpop.f32.mrb[0].mxu0
      %v288 = vadd.f32 0.0, %v287
      %v289 = vpop.f32.mrb[0].mxu0
      %v290 = vadd.f32 0.0, %v289
      %v291 = vpop.f32.mrb[0].mxu0
      %v292 = vadd.f32 0.0, %v291
      %293 = vdwg.mxu0
      %v294 = vadd.f32 %v286, %v288
      %295 = vadd.xlane.f32.xlu0 %v294
      %v296 = vpop.xlane.xlu0 %295
      %v297 = vadd.f32 %v290, %v292
      %298 = vadd.xlane.f32.xlu0 %v297
      %v299 = vpop.xlane.xlu0 %298
      %v300 = vmul.f32 %v286, %v286
      %v301 = vmul.f32 %v288, %v288
      %v302 = vmul.f32 %v290, %v290
      %v303 = vmul.f32 %v292, %v292
      %v304 = vadd.f32 %v300, %v301
      %305 = vadd.xlane.f32.xlu0 %v304
      %v306 = vpop.xlane.xlu0 %305
      %v307 = vadd.f32 %v302, %v303
      %308 = vadd.xlane.f32.xlu0 %v307
      %v309 = vpop.xlane.xlu0 %308
      %v310 = vmul.f32 %v203, 256.0
      %v311 = vmul.f32 %v204, 256.0
      %v312 = vadd.f32 %v296, %v310
      %v313 = vadd.f32 %v299, %v311
      %v314 = vmul.f32 %v203, 2.0
      %v315 = vmul.f32 %v204, 2.0
      %v316 = vmul.f32 %v314, %v296
      %v317 = vmul.f32 %v315, %v299
      %v318 = vadd.f32 %v306, %v316
      %v319 = vadd.f32 %v309, %v317
      %v320 = vmul.f32 %v310, %v203
      %v321 = vmul.f32 %v311, %v204
      %v322 = vadd.f32 %v318, %v320
      %v323 = vadd.f32 %v319, %v321
      %vm324 = vcmask 130048
      %v326 = vsel %vm324, %v201, 0
      %v329 = vsel %vm324, %v202, 0
      %331 = vmatprep.subr.mxu0 0.0
      %332 = vmatpush1.msra.mxu0 %v312
      %333 = vmatprep.subr.mxu0 0.0
      %334 = vmatpush1.msra.mxu0 %v313
      %335 = vmatprep.subr.mxu0 0.0
      %336 = vmatpush1.msra.mxu0 0.0
      %337 = vmatprep.subr.mxu0 0.0
      %338 = vmatpush1.msra.mxu0 0.0
      %339 = vmatprep.subr.mxu0 0.0
      %340 = vmatpush1.msra.mxu0 0.0
      %341 = vmatprep.subr.mxu0 0.0
      %342 = vmatpush1.msra.mxu0 0.0
      %343 = vmatprep.subr.mxu0 0.0
      %344 = vmatpush1.msra.mxu0 0.0
      %345 = vmatprep.subr.mxu0 0.0
      %346 = vmatpush1.msra.mxu0 0.0
      %347 = vmatprep.subr.mxu0 0.0
      %348 = vmatpush1.msra.mxu0 0.0
      %349 = vmatprep.subr.mxu0 0.0
      %350 = vmatpush1.msra.mxu0 0.0
      %351 = vmatprep.subr.mxu0 0.0
      %352 = vmatpush1.msra.mxu0 0.0
      %353 = vmatprep.subr.mxu0 0.0
      %354 = vmatpush1.msra.mxu0 0.0
      %355 = vmatprep.subr.mxu0 0.0
      %356 = vmatpush1.msra.mxu0 0.0
      %357 = vmatprep.subr.mxu0 0.0
      %358 = vmatpush1.msra.mxu0 0.0
      %359 = vmatprep.subr.mxu0 0.0
      %360 = vmatpush1.msra.mxu0 0.0
      %361 = vmatprep.subr.mxu0 0.0
      %362 = vmatpush1.msra.mxu0 0.0
      %363 = vmatprep.subr.mxu0 0.0
      %364 = vmatpush1.msra.mxu0 0.0
      %365 = vmatprep.subr.mxu0 0.0
      %366 = vmatpush1.msra.mxu0 0.0
      %367 = vmatprep.subr.mxu0 0.0
      %368 = vmatpush1.msra.mxu0 0.0
      %369 = vmatprep.subr.mxu0 0.0
      %370 = vmatpush1.msra.mxu0 0.0
      %371 = vmatprep.subr.mxu0 0.0
      %372 = vmatpush1.msra.mxu0 0.0
      %373 = vmatprep.subr.mxu0 0.0
      %374 = vmatpush1.msra.mxu0 0.0
      %375 = vmatprep.subr.mxu0 0.0
      %376 = vmatpush1.msra.mxu0 0.0
      %377 = vmatprep.subr.mxu0 0.0
      %378 = vmatpush1.msra.mxu0 0.0
      %379 = vmatprep.subr.mxu0 0.0
      %380 = vmatpush1.msra.mxu0 0.0
      %381 = vmatprep.subr.mxu0 0.0
      %382 = vmatpush1.msra.mxu0 0.0
      %383 = vmatprep.subr.mxu0 0.0
      %384 = vmatpush1.msra.mxu0 0.0
      %385 = vmatprep.subr.mxu0 0.0
      %386 = vmatpush1.msra.mxu0 0.0
      %387 = vmatprep.subr.mxu0 0.0
      %388 = vmatpush1.msra.mxu0 0.0
      %389 = vmatprep.subr.mxu0 0.0
      %390 = vmatpush1.msra.mxu0 0.0
      %391 = vmatprep.subr.mxu0 0.0
      %392 = vmatpush1.msra.mxu0 0.0
      %393 = vmatprep.subr.mxu0 0.0
      %394 = vmatpush1.msra.mxu0 0.0
      %395 = vmatprep.mubr.f32.mxu0 0.0
      %396 = vmatmul.mubr.f32.gmra.mrb[0].mxu0 %v326
      %v397 = vpop.f32.mrb[0].mxu0
      %v398 = vadd.f32 0.0, %v397
      %v399 = vpop.f32.mrb[0].mxu0
      %400 = vmatprep.mubr.f32.mxu0 0.0
      %401 = vmatmul.mubr.f32.gmra.mrb[0].mxu0 %v329
      %v402 = vpop.f32.mrb[0].mxu0
      %v403 = vadd.f32 0.0, %v402
      %v404 = vpop.f32.mrb[0].mxu0
      %405 = vdwg.mxu0
      %406 = vmatprep.subr.mxu0 0.0
      %407 = vmatpush1.msra.mxu0 %v322
      %408 = vmatprep.subr.mxu0 0.0
      %409 = vmatpush1.msra.mxu0 %v323
      %410 = vmatprep.subr.mxu0 0.0
      %411 = vmatpush1.msra.mxu0 0.0
      %412 = vmatprep.subr.mxu0 0.0
      %413 = vmatpush1.msra.mxu0 0.0
      %414 = vmatprep.subr.mxu0 0.0
      %415 = vmatpush1.msra.mxu0 0.0
      %416 = vmatprep.subr.mxu0 0.0
      %417 = vmatpush1.msra.mxu0 0.0
      %418 = vmatprep.subr.mxu0 0.0
      %419 = vmatpush1.msra.mxu0 0.0
      %420 = vmatprep.subr.mxu0 0.0
      %421 = vmatpush1.msra.mxu0 0.0
      %422 = vmatprep.subr.mxu0 0.0
      %423 = vmatpush1.msra.mxu0 0.0
      %424 = vmatprep.subr.mxu0 0.0
      %425 = vmatpush1.msra.mxu0 0.0
      %426 = vmatprep.subr.mxu0 0.0
      %427 = vmatpush1.msra.mxu0 0.0
      %428 = vmatprep.subr.mxu0 0.0
      %429 = vmatpush1.msra.mxu0 0.0
      %430 = vmatprep.subr.mxu0 0.0
      %431 = vmatpush1.msra.mxu0 0.0
      %432 = vmatprep.subr.mxu0 0.0
      %433 = vmatpush1.msra.mxu0 0.0
      %434 = vmatprep.subr.mxu0 0.0
      %435 = vmatpush1.msra.mxu0 0.0
      %436 = vmatprep.subr.mxu0 0.0
      %437 = vmatpush1.msra.mxu0 0.0
      %438 = vmatprep.subr.mxu0 0.0
      %439 = vmatpush1.msra.mxu0 0.0
      %440 = vmatprep.subr.mxu0 0.0
      %441 = vmatpush1.msra.mxu0 0.0
      %442 = vmatprep.subr.mxu0 0.0
      %443 = vmatpush1.msra.mxu0 0.0
      %444 = vmatprep.subr.mxu0 0.0
      %445 = vmatpush1.msra.mxu0 0.0
      %446 = vmatprep.subr.mxu0 0.0
      %447 = vmatpush1.msra.mxu0 0.0
      %448 = vmatprep.subr.mxu0 0.0
      %449 = vmatpush1.msra.mxu0 0.0
      %450 = vmatprep.subr.mxu0 0.0
      %451 = vmatpush1.msra.mxu0 0.0
      %452 = vmatprep.subr.mxu0 0.0
      %453 = vmatpush1.msra.mxu0 0.0
      %454 = vmatprep.subr.mxu0 0.0
      %455 = vmatpush1.msra.mxu0 0.0
      %456 = vmatprep.subr.mxu0 0.0
      %457 = vmatpush1.msra.mxu0 0.0
      %458 = vmatprep.subr.mxu0 0.0
      %459 = vmatpush1.msra.mxu0 0.0
      %460 = vmatprep.subr.mxu0 0.0
      %461 = vmatpush1.msra.mxu0 0.0
      %462 = vmatprep.subr.mxu0 0.0
      %463 = vmatpush1.msra.mxu0 0.0
      %464 = vmatprep.subr.mxu0 0.0
      %465 = vmatpush1.msra.mxu0 0.0
      %466 = vmatprep.subr.mxu0 0.0
      %467 = vmatpush1.msra.mxu0 0.0
      %468 = vmatprep.subr.mxu0 0.0
      %469 = vmatpush1.msra.mxu0 0.0
      %470 = vmatprep.mubr.f32.mxu0 0.0
      %471 = vmatmul.mubr.f32.gmra.mrb[0].mxu0 %v326
      %v472 = vpop.f32.mrb[0].mxu0
      %v473 = vadd.f32 0.0, %v472
      %v474 = vpop.f32.mrb[0].mxu0
      %475 = vmatprep.mubr.f32.mxu0 0.0
      %476 = vmatmul.mubr.f32.gmra.mrb[0].mxu0 %v329
      %v477 = vpop.f32.mrb[0].mxu0
      %v478 = vadd.f32 0.0, %v477
      %v479 = vpop.f32.mrb[0].mxu0
      %480 = vdwg.mxu0
      %v481 = vmul.f32 %v398, 0.001953125
      %v482 = vmul.f32 %v403, 0.001953125
      %v483 = vmul.f32 %v473, 0.001953125
      %v484 = vmul.f32 %v478, 0.001953125
      %v485 = vmul.f32 %v481, %v481
      %v486 = vmul.f32 %v482, %v482
      %v487 = vsub.f32 %v483, %v485
      %v488 = vsub.f32 %v484, %v486
      %v489 = vadd.f32 %v487, 1e-05
      %v490 = vadd.f32 %v488, 1e-05
      %v491 = vrsqrt.pop %v489
      %v492 = vrsqrt.pop %v490
      %495 = vrot.lane.b32.xlu0 %v491, 1
      %v496 = vpop.permute.xlu0 %495
      %497 = vrot.lane.b32.xlu0 %v492, 1
      %v498 = vpop.permute.xlu0 %497
      %v501 = vmul.f32 %v203, %v496
      %v502 = vmul.f32 %v204, %v498
      %v503 = vsub.f32 %v203, %v481
      %v504 = vsub.f32 %v204, %v482
      %507 = vrot.lane.b32.xlu0 %v501, 127
      %v508 = vpop.permute.xlu0 %507
      %509 = vrot.lane.b32.xlu0 %v502, 127
      %v510 = vpop.permute.xlu0 %509
      %v513 = vmul.f32 %v503, %v508
      %v514 = vmul.f32 %v504, %v510
      %517 = vrot.lane.b32.xlu0 %v513, 2
      %v518 = vpop.permute.xlu0 %517
      %519 = vrot.lane.b32.xlu0 %v514, 2
      %v520 = vpop.permute.xlu0 %519
      %v523 = vadd.f32 %v203, %v518
      %v524 = vadd.f32 %v204, %v520
      %525 = vset.pattern.permute.xlu0 1
      %526 = vperm.xlu0 %525, %v501
      %v527 = vpop.permute.xlu0 %526
      %529 = vset.pattern.permute.xlu0 1
      %530 = vperm.xlu0 %529, %v502
      %v531 = vpop.permute.xlu0 %530
      %v533 = vmul.f32 %v286, %v527
      %v534 = vmul.f32 %v288, %v527
      %v535 = vmul.f32 %v290, %v531
      %v536 = vmul.f32 %v292, %v531
      %538 = vset.pattern.permute.xlu0 2
      %539 = vperm.xlu0 %538, %v523
      %v540 = vpop.permute.xlu0 %539
      %543 = vset.pattern.permute.xlu0 2
      %544 = vperm.xlu0 %543, %v524
      %v545 = vpop.permute.xlu0 %544
      %v547 = vadd.f32 %v533, %v540
      %v548 = vadd.f32 %v534, %v540
      %v549 = vadd.f32 %v535, %v545
      %v550 = vadd.f32 %v536, %v545
      %v551 = vmax.f32 %v547, 0.0
      %v552 = vmax.f32 %v548, 0.0
      %v553 = vmax.f32 %v549, 0.0
      %v554 = vmax.f32 %v550, 0.0
      %555 = vst [vmem:[%s197] sm:$0xff] %v551
      %556 = vst [vmem:[%s197 + $0x8] sm:$0xff] %v552
      %557 = vst [vmem:[%s197 + $0x10] sm:$0xff] %v553
      %558 = vst [vmem:[%s197 + $0x18] sm:$0xff] %v554
      %p559 = scmp.lt.s32.totalorder %s15, 1
      %s560 = scalar_select %p559, %s15, 1
      %s561 = smul.addr %s560, 4
      %s562 = smul.addr %s561, 8
      %s563 = scalar_lea.vmem %s4, %s562
      // Predicated region
      $region37: #{conv2d_block.1} parent=35 // pred_check
        %p564 = pneg %p122
      $region38: #{conv2d_block.1} parent=35 // pred_check_branch
        %566 = sbr.rel (%p564) target = $region40
      $region39: #{conv2d_block.1} parent=35 // pred_region
        _
      $region40: #{conv2d_block.1} parent=35 // pred_fallthru
        _
    $region36: #{conv2d_block.1} parent=5 // pred_fallthru
      _
    %p567 = scmp.le.s32.totalorder 2, %s10
    // Predicated region
    $region41: #{conv2d_block.1} parent=5 // pred_check
      %p568 = pneg %p567
    $region42: #{conv2d_block.1} parent=5 // pred_check_branch
      %570 = sbr.rel (%p568) target = $region44
    $region43: #{conv2d_block.1} parent=5 // pred_region
      %s571 = ssub.s32 %s10, 2
      // Predicated region
      $region45: #{conv2d_block.1} parent=43 // pred_check
        %p572 = pneg %p128
      $region46: #{conv2d_block.1} parent=43 // pred_check_branch
        %574 = sbr.rel (%p572) target = $region48
      $region47: #{conv2d_block.1} parent=43 // pred_region
        %p575 = scmp.lt.s32.totalorder %s16, 1
        %s576 = scalar_select %p575, %s16, 1
        %s577 = smul.addr %s576, 4
        %s578 = smul.addr %s577, 8
        %s579 = scalar_lea.vmem %s4, %s578
      $region48: #{conv2d_block.1} parent=43 // pred_fallthru
        _
    $region44: #{conv2d_block.1} parent=5 // pred_fallthru
      _
  $region6: #{conv2d_block.1} parent=0 // loop_footer
    %s14 = sadd.s32 1, %s10
  $region7: #{conv2d_block.1} parent=0 // loop_footer_branch
    %9 = sbr.rel target = $region3
  $region8: #{conv2d_block.1} parent=0 // loop_exit
    _

</llo_original>
